<compile_context>
chip_gen: v5e
topology: v5e:2x2
jax: 0.10.0
libtpu: 0.0.40
codegen_flags: <defaults>
</compile_context>

<pallas_src>
import functools
import math

import jax
import jax.numpy as jnp
from jax.experimental import pallas as pl
from jax.experimental.pallas import tpu as pltpu

C_PAD = 128          # per-head channels padded to one full lane tile
NEG_BIG = -1e30      # additive mask value / running-max init (finite, not -inf)


def _pick_tile(n, target, align):
    """Largest tile <= target that divides n and is a multiple of `align`;
    falls back to the full extent n (a full-dim block is always legal)."""
    if n <= target:
        return n
    t = min(target, n)
    t -= t % align
    while t >= align:
        if n % t == 0:
            return t
        t -= align
    return n


# ---------------------------------------------------------------------------
# Kernel 1: fused per-head projection  x @ [W_l | W_r] + [b_l | b_r]
# ---------------------------------------------------------------------------
def gatv2_project_kernel(x_ref, w_ref, b_ref, xl_ref, xr_ref, *, c_pad):
    """grid = (row tile t, head h)

    x_ref : [TI, F_in]        node-feature row tile (reused across heads)
    w_ref : [1, F_in, 2*Cp]   fused [W_l | W_r] for head h (Cp = 128, padded)
    b_ref : [1, 1, 2*Cp]      fused [b_l | b_r]; b_l[C] == 1.0 is the constant
                              denominator column consumed by kernel 2
    xl_ref, xr_ref : [1, TI, Cp]  per-head source / target projections
    """
    xlr = jnp.dot(x_ref[...], w_ref[0],
                  preferred_element_type=jnp.float32) + b_ref[0]
    xl_ref[0] = xlr[:, :c_pad]
    xr_ref[0] = xlr[:, c_pad:]


# ---------------------------------------------------------------------------
# Kernel 2: GATv2 scores + online softmax + aggregation (flash-style)
# ---------------------------------------------------------------------------
def gatv2_attn_kernel(xr_ref, xl_ref, att_ref, bias_ref, mask_ref, out_ref,
                      m_s, acc_s, *, c_real, apply_relu):
    """grid = (head h [parallel], target tile t [parallel], source tile j [arbitrary])

    xr_ref  : [1, TI, Cp]   target projections x_r (head h, row tile t)
    xl_ref  : [1, TJ, Cp]   source projections x_l (head h, src tile j);
                            column c_real is a constant 1.0 (denominator)
    att_ref : [1, 1, Cp]    attention vector (zero in pad columns)
    bias_ref: [1, 1, Cp]    output bias (zero in pad columns)
    mask_ref: [TI, TJ]      additive adjacency bias, bf16 (0 edge / -1e30 none)
    out_ref : [TI, Cp]      lane-dense output block of the [N, H*Cp] result
    m_s     : [TI, 1]  f32  running row max (scratch)
    acc_s   : [TI, Cp] f32  running un-normalized aggregation (scratch);
                            column c_real accumulates the softmax denominator
    """
    j = pl.program_id(2)
    nj = pl.num_programs(2)

    @pl.when(j == 0)
    def _():
        m_s[...] = jnp.full_like(m_s, NEG_BIG)
        acc_s[...] = jnp.zeros_like(acc_s)

    xr = xr_ref[0]                                    # [TI, Cp] targets i
    xl = xl_ref[0]                                    # [TJ, Cp] sources j
    ti, cp = xr.shape
    tj = xl.shape[0]

    # e[i, j] = att . LeakyReLU(x_l[j] + x_r[i], 0.2) + mask[i, j]
    z = xl[None, :, :] + xr[:, None, :]               # [TI, TJ, Cp]
    g = jnp.maximum(z, 0.2 * z)                       # LeakyReLU, 2 VALU ops
    # att reduction on the MXU (frees the saturated VPU/XLU slots).
    e = jnp.dot(g.reshape(ti * tj, cp), att_ref[0].reshape(cp, 1),
                preferred_element_type=jnp.float32).reshape(ti, tj)
    e = e + mask_ref[...].astype(jnp.float32)

    # Online softmax over the source axis (per-row rescaling); self-loops
    # guarantee every row eventually sees a real edge, so any contribution
    # accumulated while the row max is still at NEG_BIG is rescaled to 0.
    m_prev = m_s[...]
    m_new = jnp.maximum(m_prev, jnp.max(e, axis=1, keepdims=True))
    alpha = jnp.exp(m_prev - m_new)
    p = jnp.exp(e - m_new)                            # [TI, TJ] un-normalized

    # Aggregation matmul in bf16 (f32 accumulate).  x_l column c_real is a
    # constant 1.0, so the same matmul accumulates the softmax denominator
    # into acc[:, c_real] -- no separate XLU row-sum.
    acc_s[...] = alpha * acc_s[...] + jnp.dot(
        p.astype(jnp.bfloat16), xl.astype(jnp.bfloat16),
        preferred_element_type=jnp.float32)
    m_s[...] = m_new

    @pl.when(j == nj - 1)
    def _():
        acc = acc_s[...]
        denom = acc[:, c_real:c_real + 1]             # [TI, 1]
        out = acc * pl.reciprocal(denom, approx=False) + bias_ref[0]
        if apply_relu:
            out = jnp.maximum(out, 0.0)
        out_ref[...] = out.astype(out_ref.dtype)


# ---------------------------------------------------------------------------
# Layer wrapper
# ---------------------------------------------------------------------------
def gatv2_layer(x, params, mask_bias, *, heads, out_ch, apply_relu):
    n, f_in = x.shape
    ti = _pick_tile(n, 256, 8)     # target-row tile
    tj = _pick_tile(n, 128, 128)   # source tile (lane dim of the mask block)
    nt, nj = n // ti, n // tj

    # --- per-head fused projection --------------------------------------
    xl, xr = pl.pallas_call(
        functools.partial(gatv2_project_kernel, c_pad=C_PAD),
        out_shape=(jax.ShapeDtypeStruct((heads, n, C_PAD), jnp.float32),
                   jax.ShapeDtypeStruct((heads, n, C_PAD), jnp.float32)),
        grid_spec=pltpu.PrefetchScalarGridSpec(
            num_scalar_prefetch=0,
            grid=(nt, heads),
            in_specs=[
                pl.BlockSpec((ti, f_in), lambda t, h: (t, 0)),             # x
                pl.BlockSpec((1, f_in, 2 * C_PAD), lambda t, h: (h, 0, 0)),  # W
                pl.BlockSpec((1, 1, 2 * C_PAD), lambda t, h: (h, 0, 0)),     # b
            ],
            out_specs=(pl.BlockSpec((1, ti, C_PAD), lambda t, h: (h, t, 0)),
                       pl.BlockSpec((1, ti, C_PAD), lambda t, h: (h, t, 0))),
        ),
        compiler_params=pltpu.CompilerParams(
            dimension_semantics=("parallel", "parallel")),
    )(x, params["w"], params["b"])

    # --- attention + aggregation (flash-style over the source axis) -----
    # NOTE(scale): single-buffering (pipeline_mode=pl.Buffered(1)) on att/bias
    # and bf16 score math on v6e/v7x are further knobs left out for a single
    # portable code path.
    out = pl.pallas_call(
        functools.partial(gatv2_attn_kernel, c_real=out_ch,
                          apply_relu=apply_relu),
        out_shape=jax.ShapeDtypeStruct((n, heads * C_PAD), jnp.float32),
        grid_spec=pltpu.PrefetchScalarGridSpec(
            num_scalar_prefetch=0,
            grid=(heads, nt, nj),
            in_specs=[
                pl.BlockSpec((1, ti, C_PAD), lambda h, t, j: (h, t, 0)),  # x_r
                pl.BlockSpec((1, tj, C_PAD), lambda h, t, j: (h, j, 0)),  # x_l
                pl.BlockSpec((1, 1, C_PAD), lambda h, t, j: (h, 0, 0)),   # att
                pl.BlockSpec((1, 1, C_PAD), lambda h, t, j: (h, 0, 0)),   # bias
                pl.BlockSpec((ti, tj), lambda h, t, j: (t, j)),           # mask
            ],
            out_specs=pl.BlockSpec((ti, C_PAD), lambda h, t, j: (t, h)),
            scratch_shapes=[pltpu.VMEM((ti, 1), jnp.float32),      # running max
                            pltpu.VMEM((ti, C_PAD), jnp.float32)],  # running acc
        ),
        compiler_params=pltpu.CompilerParams(
            dimension_semantics=("parallel", "parallel", "arbitrary"),
            vmem_limit_bytes=48 * 1024 * 1024),
    )(xr, xl, params["att"], params["bias"], mask_bias)

    return out    # [N, heads * C_PAD], lane-dense; pad cols handled downstream


# ---------------------------------------------------------------------------
# Parameters / graph helpers
# ---------------------------------------------------------------------------
def glorot(key, shape, fan_in, fan_out):
    a = math.sqrt(6.0 / (fan_in + fan_out))
    return jax.random.uniform(key, shape, jnp.float32, minval=-a, maxval=a)


def init_gatv2_params(key, in_dim, out_ch, heads, in_valid_mask=None):
    """Parameters padded to C_PAD lanes.  `in_valid_mask` (bool [in_dim])
    zeroes weight rows that correspond to pad columns of the previous layer."""
    kl, kr, ka = jax.random.split(key, 3)
    fan_in = in_dim if in_valid_mask is None else int(in_valid_mask.sum())

    def pad_cols(w):  # [..., out_ch] -> [..., C_PAD]
        return jnp.pad(w, [(0, 0)] * (w.ndim - 1) + [(0, C_PAD - out_ch)])

    wl = pad_cols(glorot(kl, (heads, in_dim, out_ch), fan_in, heads * out_ch))
    wr = pad_cols(glorot(kr, (heads, in_dim, out_ch), fan_in, heads * out_ch))
    if in_valid_mask is not None:
        m = in_valid_mask.astype(jnp.float32)[None, :, None]
        wl, wr = wl * m, wr * m
    w = jnp.concatenate([wl, wr], axis=-1)                       # [H, F, 2*Cp]

    # Fused [b_l | b_r]; b_l[out_ch] = 1.0 feeds the constant 1.0 column of
    # x_l that folds the softmax denominator into the aggregation matmul.
    b = jnp.zeros((heads, 1, 2 * C_PAD), jnp.float32).at[:, 0, out_ch].set(1.0)
    att = pad_cols(glorot(ka, (heads, 1, out_ch), out_ch, 1))    # [H, 1, Cp]
    bias = jnp.zeros((heads, 1, C_PAD), jnp.float32)
    return dict(w=w, b=b, att=att, bias=bias)


def build_mask_bias(edge_index, num_nodes):
    """Additive attention bias in bf16: 0.0 where edge j -> i exists,
    -1e30 otherwise.  add_self_loops=True -> diagonal is always an edge."""
    src, dst = edge_index[0], edge_index[1]
    adj = jnp.zeros((num_nodes, num_nodes), jnp.bool_)
    adj = adj.at[dst, src].set(True)
    diag = jnp.arange(num_nodes)
    adj = adj.at[diag, diag].set(True)
    return jnp.where(adj, 0.0, NEG_BIG).astype(jnp.bfloat16)


def gat_v2_forward(params1, params2, x, edge_index):
    n = x.shape[0]
    mask_bias = build_mask_bias(edge_index, n)
    # gat1: GATv2Conv(4, 120, heads=8) with fused ReLU; output [N, 8*128].
    h = gatv2_layer(x, params1, mask_bias, heads=8, out_ch=120,
                    apply_relu=True)
    # TODO(synk): F.dropout(x) (training-mode p=0.5) is stochastic in the
    # reference; treated as eval-mode identity here.
    # gat2: GATv2Conv(960, 4, heads=1); pad columns of h are killed by the
    # zeroed weight rows (in_valid_mask) baked into params2.
    out = gatv2_layer(h, params2, mask_bias, heads=1, out_ch=4,
                      apply_relu=False)
    return out[:, :4]


if __name__ == "__main__":
    key = jax.random.PRNGKey(0)
    k_x, k_p1, k_p2 = jax.random.split(key, 3)

    N = 16
    x = jax.random.normal(k_x, (N, 4), jnp.float32)

    # deterministic small graph: bidirectional ring -> edge_index [2, 32]
    idx = jnp.arange(N)
    src = jnp.concatenate([idx, (idx + 1) % N]).astype(jnp.int32)
    dst = jnp.concatenate([(idx + 1) % N, idx]).astype(jnp.int32)
    edge_index = jnp.stack([src, dst])                     # [2, 2N]

    params1 = init_gatv2_params(k_p1, in_dim=4, out_ch=120, heads=8)
    # layer-1 emits [N, 8*128]; only lanes 0..119 of each head block are real.
    valid2 = (jnp.arange(8 * C_PAD) % C_PAD) < 120
    params2 = init_gatv2_params(k_p2, in_dim=8 * C_PAD, out_ch=4, heads=1,
                                in_valid_mask=valid2)

    out = gat_v2_forward(params1, params2, x, edge_index)
    jax.block_until_ready(out)
    assert out.shape == (N, 4) and out.dtype == jnp.float32
    assert bool(jnp.all(jnp.isfinite(out)))
    print("KERNEL_OK")
</pallas_src>

<mosaic_0001>
module attributes {stable_mosaic.version = 11 : i64} {
  func.func @gatv2_project_kernel(%arg0: i32, %arg1: i32, %arg2: memref<16x4xf32, #tpu.memory_space<vmem>>, %arg3: memref<1x4x256xf32, #tpu.memory_space<vmem>>, %arg4: memref<1x1x256xf32, #tpu.memory_space<vmem>>, %arg5: memref<1x16x128xf32, #tpu.memory_space<vmem>>, %arg6: memref<1x16x128xf32, #tpu.memory_space<vmem>>) attributes {dimension_semantics = [#tpu.dimension_semantics<parallel>, #tpu.dimension_semantics<parallel>], iteration_bounds = array<i64: 1, 8>, scalar_prefetch = 0 : i64, scratch_operands = 0 : i64, tpu.core_type = #tpu.core_type<tc>, window_params = [{transform_indices = @transform_0, window_bounds = array<i64: 16, 4>}, {transform_indices = @transform_1, window_bounds = array<i64: 1, 4, 256>}, {transform_indices = @transform_2, window_bounds = array<i64: 1, 1, 256>}, {transform_indices = @transform_3, window_bounds = array<i64: 1, 16, 128>}, {transform_indices = @transform_4, window_bounds = array<i64: 1, 16, 128>}]} {
    %c0 = arith.constant 0 : index
    %c0_0 = arith.constant 0 : index
    %0 = vector.load %arg2[%c0, %c0_0] : memref<16x4xf32, #tpu.memory_space<vmem>>, vector<16x4xf32>
    %c0_1 = arith.constant 0 : index
    %c0_2 = arith.constant 0 : index
    %c0_3 = arith.constant 0 : index
    %1 = vector.load %arg3[%c0_1, %c0_2, %c0_3] : memref<1x4x256xf32, #tpu.memory_space<vmem>>, vector<1x4x256xf32>
    %2 = vector.shape_cast %1 : vector<1x4x256xf32> to vector<4x256xf32>
    %cst = arith.constant dense<0.000000e+00> : vector<16x256xf32>
    %3 = tpu.matmul %0, %2, %cst {dimension_numbers = #tpu.dot_dimension_numbers<[1], [0], [0], [1], [0, 0, 1, 1], [], []>} : vector<16x4xf32>, vector<4x256xf32>, vector<16x256xf32> -> vector<16x256xf32>
    %c0_4 = arith.constant 0 : index
    %c0_5 = arith.constant 0 : index
    %c0_6 = arith.constant 0 : index
    %4 = vector.load %arg4[%c0_4, %c0_5, %c0_6] : memref<1x1x256xf32, #tpu.memory_space<vmem>>, vector<1x1x256xf32>
    %5 = vector.shape_cast %4 : vector<1x1x256xf32> to vector<1x256xf32>
    %6 = vector.broadcast %5 : vector<1x256xf32> to vector<16x256xf32>
    %7 = arith.addf %3, %6 : vector<16x256xf32>
    %8 = vector.extract_strided_slice %7 {offsets = [0, 0], sizes = [16, 128], strides = [1, 1]} : vector<16x256xf32> to vector<16x128xf32>
    %c0_7 = arith.constant 0 : index
    %c0_8 = arith.constant 0 : index
    %c0_9 = arith.constant 0 : index
    %9 = vector.load %arg5[%c0_7, %c0_8, %c0_9] : memref<1x16x128xf32, #tpu.memory_space<vmem>>, vector<1x16x128xf32>
    %10 = vector.shape_cast %9 : vector<1x16x128xf32> to vector<16x128xf32>
    %11 = vector.shape_cast %8 : vector<16x128xf32> to vector<1x16x128xf32>
    tpu.vector_store %arg5[%c0_7, %c0_8, %c0_9], %11 {strides = array<i32>} : memref<1x16x128xf32, #tpu.memory_space<vmem>>, vector<1x16x128xf32>,
    %12 = vector.extract_strided_slice %7 {offsets = [0, 128], sizes = [16, 128], strides = [1, 1]} : vector<16x256xf32> to vector<16x128xf32>
    %c0_10 = arith.constant 0 : index
    %c0_11 = arith.constant 0 : index
    %c0_12 = arith.constant 0 : index
    %13 = vector.load %arg6[%c0_10, %c0_11, %c0_12] : memref<1x16x128xf32, #tpu.memory_space<vmem>>, vector<1x16x128xf32>
    %14 = vector.shape_cast %13 : vector<1x16x128xf32> to vector<16x128xf32>
    %15 = vector.shape_cast %12 : vector<16x128xf32> to vector<1x16x128xf32>
    tpu.vector_store %arg6[%c0_10, %c0_11, %c0_12], %15 {strides = array<i32>} : memref<1x16x128xf32, #tpu.memory_space<vmem>>, vector<1x16x128xf32>,
    return
  }
  func.func @transform_0(%arg0: i32, %arg1: i32) -> (i32, i32) {
    %c0_i32 = arith.constant 0 : i32
    %c0_i32_0 = arith.constant 0 : i32
    return %arg0, %c0_i32 : i32, i32
  }
  func.func @transform_1(%arg0: i32, %arg1: i32) -> (i32, i32, i32) {
    %c0_i32 = arith.constant 0 : i32
    %c0_i32_0 = arith.constant 0 : i32
    %c0_i32_1 = arith.constant 0 : i32
    return %arg1, %c0_i32, %c0_i32_0 : i32, i32, i32
  }
  func.func @transform_2(%arg0: i32, %arg1: i32) -> (i32, i32, i32) {
    %c0_i32 = arith.constant 0 : i32
    %c0_i32_0 = arith.constant 0 : i32
    %c0_i32_1 = arith.constant 0 : i32
    return %arg1, %c0_i32, %c0_i32_0 : i32, i32, i32
  }
  func.func @transform_3(%arg0: i32, %arg1: i32) -> (i32, i32, i32) {
    %c0_i32 = arith.constant 0 : i32
    %c0_i32_0 = arith.constant 0 : i32
    return %arg1, %arg0, %c0_i32 : i32, i32, i32
  }
  func.func @transform_4(%arg0: i32, %arg1: i32) -> (i32, i32, i32) {
    %c0_i32 = arith.constant 0 : i32
    %c0_i32_0 = arith.constant 0 : i32
    return %arg1, %arg0, %c0_i32 : i32, i32, i32
  }
}

</mosaic_0001>

<llo_original>
// kernel: tpu_custom_call.1
$region0: #{tpu_custom_call.1}
  #allocation0 [shape = 'u32[]', space=smem, size = 0x4, offset = 0x4, fixed_abs, tag = 'smem constant byte address 0x4 - core index']
  #allocation1 [shape = 'u32[72,128]{1,0:T(1,128)}', space=vmem, size = 0x9000, scoped, tag = 'internal scratch']
  %s0 = inlined_call_operand.vmem [shape: f32[16,4], index: 0, kind: input, shape index: {}]
  %s1 = inlined_call_operand.hbm [shape: f32[8,4,256], index: 1, kind: input, shape index: {}]
  %s2 = inlined_call_operand.vmem [shape: f32[8,1,256], index: 2, kind: input, shape index: {}]
  %s3 = inlined_call_operand.hbm [shape: f32[8,16,128], index: 3, kind: output, shape index: {0}]
  %s4 = inlined_call_operand.hbm [shape: f32[8,16,128], index: 4, kind: output, shape index: {1}]
  %5 = xla_tuple %s3, %s4
  %s6 = sld [smem:[#allocation0]]
  $region57: #{tpu_custom_call.1} parent=0
    _
  %s8 = ssub.s32 1, %s6
  %s9 = scalar_select 0, %s8, %s6
  $region1: #{tpu_custom_call.1} parent=0
    #allocation2 [shape = 'u8[8192]{0}', space=vmem, size = 0x2000, scoped, tag = 'input window, operand 1']
    #allocation3 [shape = 's32[2]{0}', space=sflag, size = 0x8, scoped, tag = 'scoped memory for tpu_custom_call.1']
    #allocation4 [shape = 's32[2]{0}', space=sflag, size = 0x8, scoped, tag = 'scoped memory for tpu_custom_call.1']
    #allocation5 [shape = 'u8[16384]{0}', space=vmem, size = 0x4000, scoped, tag = 'output window, operand 0']
    #allocation6 [shape = 'u8[16384]{0}', space=vmem, size = 0x4000, scoped, tag = 'output window, operand 1']
    #allocation7 [shape = 's32[2]{0}', space=sflag, size = 0x8, scoped, tag = 'scoped memory for tpu_custom_call.1']
    %10 = vsyncpa [#allocation3], 0
    %s11 = scalar_lea.sflag [#allocation3], 1
    %12 = vsyncpa %s11, 0
    %13 = vsyncpa [#allocation4], 0
    %s14 = scalar_lea.sflag [#allocation4], 1
    %15 = vsyncpa %s14, 0
    %16 = vsyncpa [#allocation7], 0
    %s17 = scalar_lea.sflag [#allocation7], 1
    %18 = vsyncpa %s17, 0
    loop: start=0, step=1, limit=10
    $region2: #{tpu_custom_call.1} parent=1 // loop_pre_header
      _
    $region3: #{tpu_custom_call.1} parent=1 // loop_header
      %s20 = sphi 0, %s24
      %p21 = scmp.ge.s32.totalorder %s20, 10
      %s27 = sphi 0, %s39
      %s28 = sphi 0, %s35
      %s29 = sphi 0, %s27
      %s30 = sphi 0, %s28
      %s31 = sphi 0, %s29
      %s32 = sphi 0, %s30
      %s42 = sphi 0, %s44
      %s45 = sphi 0, %s42
      %s46 = sphi 0, %s45
      %s62 = sphi 0, %s46
      %s68 = sphi 0, %s70
      %s71 = sphi 0, %s68
      %s72 = sphi 0, %s71
      %s88 = sphi 0, %s72
      %s94 = sphi 0, %s96
      %s97 = sphi 0, %s94
      %s98 = sphi 0, %s97
      %s114 = sphi 0, %s98
      %s122 = sphi 0, %s124
      %s125 = sphi 0, %s122
      %s126 = sphi 0, %s125
      %s142 = sphi 0, %s126
      %s150 = sphi 0, %s152
      %s153 = sphi 0, %s150
      %s154 = sphi 0, %s153
      %s170 = sphi 0, %s154
    $region4: #{tpu_custom_call.1} parent=1 // loop_header_branch
      %23 = sbr.rel (%p21) target = $region8
    $region5: #{tpu_custom_call.1} parent=1 // loop_body
      %s25 = ssub.s32 %s20, 1
      %s26 = ssub.s32 %s20, 2
      %s33 = sadd.s32 1, %s28
      %p34 = scmp.ge.s32.totalorder %s33, 8
      %s35 = scalar_select %p34, 0, %s33
      %s36 = sadd.s32 1, %s27
      %s37 = scalar_select %p34, %s36, %s27
      %p38 = scmp.ge.s32.totalorder %s37, 1
      %s39 = scalar_select %p38, 0, %s37
      %s40 = ssub.s32 %s27, %s39
      %p41 = scmp.eq.s32.totalorder %s40, 0
      %s43 = sadd.s32 %s42, 1
      %s44 = scalar_select %p41, %s42, %s43
      %p47 = pneg %p41
      %p48 = scmp.eq.s32.totalorder %s20, 7
      %p49 = por %p47, %p48
      %p50 = scmp.ne.s32.totalorder %s42, %s45
      %p51 = scmp.eq.s32.totalorder %s20, 0
      %p52 = por %p50, %p51
      %p53 = scmp.ne.s32.totalorder %s42, %s45
      %p54 = scmp.eq.s32.totalorder %s25, 7
      %p55 = por %p53, %p54
      %p56 = scmp.ne.s32.totalorder %s45, %s46
      %p57 = scmp.eq.s32.totalorder %s25, 0
      %p58 = por %p56, %p57
      %p59 = scmp.ne.s32.totalorder %s45, %s46
      %p60 = scmp.eq.s32.totalorder %s26, 7
      %p61 = por %p59, %p60
      %p63 = scmp.ne.s32.totalorder %s46, %s62
      %p64 = scmp.eq.s32.totalorder %s26, 0
      %p65 = por %p63, %p64
      %s66 = ssub.s32 %s28, %s35
      %p67 = scmp.eq.s32.totalorder %s66, 0
      %s69 = sadd.s32 %s68, 1
      %s70 = scalar_select %p67, %s68, %s69
      %p73 = pneg %p67
      %p74 = scmp.eq.s32.totalorder %s20, 7
      %p75 = por %p73, %p74
      %p76 = scmp.ne.s32.totalorder %s68, %s71
      %p77 = scmp.eq.s32.totalorder %s20, 0
      %p78 = por %p76, %p77
      %p79 = scmp.ne.s32.totalorder %s68, %s71
      %p80 = scmp.eq.s32.totalorder %s25, 7
      %p81 = por %p79, %p80
      %p82 = scmp.ne.s32.totalorder %s71, %s72
      %p83 = scmp.eq.s32.totalorder %s25, 0
      %p84 = por %p82, %p83
      %p85 = scmp.ne.s32.totalorder %s71, %s72
      %p86 = scmp.eq.s32.totalorder %s26, 7
      %p87 = por %p85, %p86
      %p89 = scmp.ne.s32.totalorder %s72, %s88
      %p90 = scmp.eq.s32.totalorder %s26, 0
      %p91 = por %p89, %p90
      %s92 = ssub.s32 %s28, %s35
      %p93 = scmp.eq.s32.totalorder %s92, 0
      %s95 = sadd.s32 %s94, 1
      %s96 = scalar_select %p93, %s94, %s95
      %p99 = pneg %p93
      %p100 = scmp.eq.s32.totalorder %s20, 7
      %p101 = por %p99, %p100
      %p102 = scmp.ne.s32.totalorder %s94, %s97
      %p103 = scmp.eq.s32.totalorder %s20, 0
      %p104 = por %p102, %p103
      %p105 = scmp.ne.s32.totalorder %s94, %s97
      %p106 = scmp.eq.s32.totalorder %s25, 7
      %p107 = por %p105, %p106
      %p108 = scmp.ne.s32.totalorder %s97, %s98
      %p109 = scmp.eq.s32.totalorder %s25, 0
      %p110 = por %p108, %p109
      %p111 = scmp.ne.s32.totalorder %s97, %s98
      %p112 = scmp.eq.s32.totalorder %s26, 7
      %p113 = por %p111, %p112
      %p115 = scmp.ne.s32.totalorder %s98, %s114
      %p116 = scmp.eq.s32.totalorder %s26, 0
      %p117 = por %p115, %p116
      %s118 = ssub.s32 %s28, %s35
      %s119 = ssub.s32 %s27, %s39
      %s120 = sor.u32 %s118, %s119
      %p121 = scmp.eq.s32.totalorder %s120, 0
      %s123 = sadd.s32 %s122, 1
      %s124 = scalar_select %p121, %s122, %s123
      %p127 = pneg %p121
      %p128 = scmp.eq.s32.totalorder %s20, 7
      %p129 = por %p127, %p128
      %p130 = scmp.ne.s32.totalorder %s122, %s125
      %p131 = scmp.eq.s32.totalorder %s20, 0
      %p132 = por %p130, %p131
      %p133 = scmp.ne.s32.totalorder %s122, %s125
      %p134 = scmp.eq.s32.totalorder %s25, 7
      %p135 = por %p133, %p134
      %p136 = scmp.ne.s32.totalorder %s125, %s126
      %p137 = scmp.eq.s32.totalorder %s25, 0
      %p138 = por %p136, %p137
      %p139 = scmp.ne.s32.totalorder %s125, %s126
      %p140 = scmp.eq.s32.totalorder %s26, 7
      %p141 = por %p139, %p140
      %p143 = scmp.ne.s32.totalorder %s126, %s142
      %p144 = scmp.eq.s32.totalorder %s26, 0
      %p145 = por %p143, %p144
      %s146 = ssub.s32 %s28, %s35
      %s147 = ssub.s32 %s27, %s39
      %s148 = sor.u32 %s146, %s147
      %p149 = scmp.eq.s32.totalorder %s148, 0
      %s151 = sadd.s32 %s150, 1
      %s152 = scalar_select %p149, %s150, %s151
      %p155 = pneg %p149
      %p156 = scmp.eq.s32.totalorder %s20, 7
      %p157 = por %p155, %p156
      %p158 = scmp.ne.s32.totalorder %s150, %s153
      %p159 = scmp.eq.s32.totalorder %s20, 0
      %p160 = por %p158, %p159
      %p161 = scmp.ne.s32.totalorder %s150, %s153
      %p162 = scmp.eq.s32.totalorder %s25, 7
      %p163 = por %p161, %p162
      %p164 = scmp.ne.s32.totalorder %s153, %s154
      %p165 = scmp.eq.s32.totalorder %s25, 0
      %p166 = por %p164, %p165
      %p167 = scmp.ne.s32.totalorder %s153, %s154
      %p168 = scmp.eq.s32.totalorder %s26, 7
      %p169 = por %p167, %p168
      %p171 = scmp.ne.s32.totalorder %s154, %s170
      %p172 = scmp.eq.s32.totalorder %s26, 0
      %p173 = por %p171, %p172
      %p174 = scmp.le.s32.totalorder 1, %s20
      %p175 = scmp.lt.s32.totalorder %s20, 9
      %p176 = pnand %p174, %p175
      %p177 = pneg %p176
      // Predicated region
      $region9: #{tpu_custom_call.1} parent=5 // pred_check
        _
      $region10: #{tpu_custom_call.1} parent=5 // pred_check_branch
        %179 = sbr.rel (%p176) target = $region12
      $region11: #{tpu_custom_call.1} parent=5 // pred_region
        %s180 = ssub.s32 %s20, 1
        // Predicated region
        $region13: #{tpu_custom_call.1} parent=11 // pred_check
          %p181 = pneg %p58
        $region14: #{tpu_custom_call.1} parent=11 // pred_check_branch
          %183 = sbr.rel (%p181) target = $region16
        $region15: #{tpu_custom_call.1} parent=11 // pred_region
          %s184 = smul.u32 2, %s29
          %p185 = scmp.lt.s32.totalorder %s184, 1
          %s186 = scalar_select %p185, %s184, 1
          %s187 = smul.addr %s186, 8
          %s188 = scalar_lea.vmem %s0, %s187
          %s189 = smul.u32 2, %s29
        $region16: #{tpu_custom_call.1} parent=11 // pred_fallthru
          _
      $region12: #{tpu_custom_call.1} parent=5 // pred_fallthru
        _
      %p190 = scmp.lt.s32.totalorder %s20, 8
      // Predicated region
      $region17: #{tpu_custom_call.1} parent=5 // pred_check
        %p191 = pneg %p190
      $region18: #{tpu_custom_call.1} parent=5 // pred_check_branch
        %193 = sbr.rel (%p191) target = $region20
      $region19: #{tpu_custom_call.1} parent=5 // pred_region
        // Predicated region
        $region21: #{tpu_custom_call.1} parent=19 // pred_check
          %p194 = pneg %p78
        $region22: #{tpu_custom_call.1} parent=19 // pred_check_branch
          %196 = sbr.rel (%p194) target = $region24
        $region23: #{tpu_custom_call.1} parent=19 // pred_region
          %s197 = sand.u32 %s68, 1
          %s198 = scalar_lea.sflag [#allocation3], %s197
          %s199 = sand.u32 %s68, 1
          %s200 = smul.addr %s199, 8
          %s201 = scalar_lea.vmem [#allocation2], %s200
          %203 = vsyncadd %s198, 0
          %s204 = smul.addr %s28, 2
          %s205 = smul.addr %s204, 4
          %s206 = scalar_lea.hbm %s1, %s205
          %s208 = sshll.u32 %s206, 4
          %s209 = int_to_ptr.hbm [resolvable:$true] %s208
          %s210 = sshll.u32 %s201, 4
          %s211 = int_to_ptr.vmem [resolvable:$true] %s210
          %213 = dma.hbm_to_vmem [thread:$0]  %s209, 128, %s211, %s198
        $region24: #{tpu_custom_call.1} parent=19 // pred_fallthru
          _
        // Predicated region
        $region25: #{tpu_custom_call.1} parent=19 // pred_check
          %p214 = pneg %p104
        $region26: #{tpu_custom_call.1} parent=19 // pred_check_branch
          %216 = sbr.rel (%p214) target = $region28
        $region27: #{tpu_custom_call.1} parent=19 // pred_region
          %p217 = scmp.lt.s32.totalorder %s28, 7
          %s218 = scalar_select %p217, %s28, 7
          %s219 = smul.addr %s218, 2
          %s220 = scalar_lea.vmem %s2, %s219
        $region28: #{tpu_custom_call.1} parent=19 // pred_fallthru
          _
      $region20: #{tpu_custom_call.1} parent=5 // pred_fallthru
        _
      %p221 = scmp.le.s32.totalorder 1, %s20
      %p222 = scmp.lt.s32.totalorder %s20, 9
      %p223 = pnand %p221, %p222
      %p224 = pneg %p223
      // Predicated region
      $region29: #{tpu_custom_call.1} parent=5 // pred_check
        _
      $region30: #{tpu_custom_call.1} parent=5 // pred_check_branch
        %226 = sbr.rel (%p223) target = $region32
      $region31: #{tpu_custom_call.1} parent=5 // pred_region
        %s227 = ssub.s32 %s20, 1
        %s228 = sand.u32 %s71, 1
        %s229 = scalar_lea.sflag [#allocation3], %s228
        %s230 = sand.u32 %s71, 1
        %s231 = smul.addr %s230, 8
        %s232 = scalar_lea.vmem [#allocation2], %s231
        // Predicated region
        $region33: #{tpu_custom_call.1} parent=31 // pred_check
          %p233 = pneg %p84
        $region34: #{tpu_custom_call.1} parent=31 // pred_check_branch
          %235 = sbr.rel (%p233) target = $region36
        $region35: #{tpu_custom_call.1} parent=31 // pred_region
          %237 = dma.done %s229, 128
        $region36: #{tpu_custom_call.1} parent=31 // pred_fallthru
          _
        %s238 = smul.u32 2, %s29
        %p239 = scmp.lt.s32.totalorder %s238, 1
        %s240 = scalar_select %p239, %s238, 1
        %s241 = smul.addr %s240, 8
        %s242 = scalar_lea.vmem %s0, %s241
        %p243 = pneg %p58
        %p244 = pneg %p55
        %s245 = sand.u32 %s71, 1
        %s246 = scalar_lea.sflag [#allocation3], %s245
        %s247 = sand.u32 %s71, 1
        %s248 = smul.addr %s247, 8
        %s249 = scalar_lea.vmem [#allocation2], %s248
        %p250 = pneg %p84
        %p251 = pneg %p81
        %p252 = scmp.lt.s32.totalorder %s30, 7
        %s253 = scalar_select %p252, %s30, 7
        %s254 = smul.addr %s253, 2
        %s255 = scalar_lea.vmem %s2, %s254
        %p256 = pneg %p110
        %p257 = pneg %p107
        %p258 = pneg %p138
        %p259 = pneg %p135
        %s260 = sand.u32 %s125, 1
        %s261 = scalar_lea.sflag [#allocation4], %s260
        %s262 = sand.u32 %s125, 1
        %s263 = smul.addr %s262, 16
        %s264 = scalar_lea.vmem [#allocation5], %s263
        %p265 = pneg %p166
        %p266 = pneg %p163
        %s267 = sand.u32 %s153, 1
        %s268 = scalar_lea.sflag [#allocation7], %s267
        %s269 = sand.u32 %s153, 1
        %s270 = smul.addr %s269, 16
        %s271 = scalar_lea.vmem [#allocation6], %s270
        %s272 = smul.u32 2, %s29
        %p273 = scmp.lt.s32.totalorder %s272, 1
        %s274 = scalar_select %p273, %s272, 1
        %s275 = smul.addr %s274, 8
        %s276 = scalar_lea.vmem %s0, %s275
        %s277 = smul.u32 2, %s29
        %p278 = scmp.lt.s32.totalorder %s30, 7
        %s279 = scalar_select %p278, %s30, 7
        %s280 = smul.addr %s279, 2
        %s281 = scalar_lea.vmem %s2, %s280
        %s282 = smul.u32 2, %s29
        %s283 = smul.u32 2, %s29
        %v284 = vld [vmem:[%s276] sm:$0xff]
        %v285 = vld [vmem:[%s276 + $0x8] sm:$0xff]
        %v286 = vld [vmem:[%s232] sm:$0xff]
        %v287 = vld [vmem:[%s281] sm:$0x3]
        %v289 = vperm.slane %v287, 0
        %v290 = vperm.slane %v287, 1
        %294 = vst [vmem:[#allocation1] ss:$2 sm:$0xff] %v286
        %v295 = vld.sshfl [vmem:[#allocation1] sm:$0xff pattern:$0x75316420]
        %v296 = vld.sshfl [vmem:[#allocation1 + $0x8] sm:$0xff pattern:$0x75316420]
        %vm297 = vcmask 31744
        %v299 = vsel %vm297, %v284, 0
        %v302 = vsel %vm297, %v285, 0
        %vm304 = vcmask 1043456
        %v305 = vsel %vm304, %v295, 0
        %v307 = vsel %vm304, %v296, 0
        %309 = vmatpush.msra.mxu0 0.0
        %310 = vmatpush.msra.mxu0 0.0
        %311 = vmatpush.msra.mxu0 0.0
        %312 = vmatpush.msra.mxu0 0.0
        %313 = vmatpush.msra.mxu0 0.0
        %314 = vmatpush.msra.mxu0 0.0
        %315 = vmatpush.msra.mxu0 0.0
        %316 = vmatpush.msra.mxu0 0.0
        %317 = vmatpush.msra.mxu0 0.0
        %318 = vmatpush.msra.mxu0 0.0
        %319 = vmatpush.msra.mxu0 0.0
        %320 = vmatpush.msra.mxu0 0.0
        %321 = vmatpush.msra.mxu0 0.0
        %322 = vmatpush.msra.mxu0 0.0
        %323 = vmatpush.msra.mxu0 0.0
        %324 = vmatpush.msra.mxu0 %v305
        %325 = vmatmul.f32.gmra.mxu0 %v299
        %v326 = vpop.f32.mrf.mxu0
        %v327 = vadd.f32 %v289, %v326
        %328 = vmatmul.f32.gmra.mxu0 %v302
        %v329 = vpop.f32.mrf.mxu0
        %v330 = vadd.f32 %v289, %v329
        %331 = vdwg.mxu0
        %332 = vmatpush.msra.mxu0 0.0
        %333 = vmatpush.msra.mxu0 0.0
        %334 = vmatpush.msra.mxu0 0.0
        %335 = vmatpush.msra.mxu0 0.0
        %336 = vmatpush.msra.mxu0 0.0
        %337 = vmatpush.msra.mxu0 0.0
        %338 = vmatpush.msra.mxu0 0.0
        %339 = vmatpush.msra.mxu0 0.0
        %340 = vmatpush.msra.mxu0 0.0
        %341 = vmatpush.msra.mxu0 0.0
        %342 = vmatpush.msra.mxu0 0.0
        %343 = vmatpush.msra.mxu0 0.0
        %344 = vmatpush.msra.mxu0 0.0
        %345 = vmatpush.msra.mxu0 0.0
        %346 = vmatpush.msra.mxu0 0.0
        %347 = vmatpush.msra.mxu0 %v307
        %348 = vmatmul.f32.gmra.mxu0 %v299
        %v349 = vpop.f32.mrf.mxu0
        %v350 = vadd.f32 %v290, %v349
        %351 = vmatmul.f32.gmra.mxu0 %v302
        %v352 = vpop.f32.mrf.mxu0
        %v353 = vadd.f32 %v290, %v352
        %354 = vdwg.mxu0
        %355 = vst [vmem:[%s264] sm:$0xff] %v327
        %356 = vst [vmem:[%s264 + $0x8] sm:$0xff] %v330
        %357 = vst [vmem:[%s271] sm:$0xff] %v350
        %358 = vst [vmem:[%s271 + $0x8] sm:$0xff] %v353
        %s359 = sand.u32 %s125, 1
        %s360 = scalar_lea.sflag [#allocation4], %s359
        %s361 = sand.u32 %s125, 1
        %s362 = smul.addr %s361, 16
        %s363 = scalar_lea.vmem [#allocation5], %s362
        %s364 = sand.u32 %s153, 1
        %s365 = scalar_lea.sflag [#allocation7], %s364
        %s366 = sand.u32 %s153, 1
        %s367 = smul.addr %s366, 16
        %s368 = scalar_lea.vmem [#allocation6], %s367
        // Predicated region
        $region37: #{tpu_custom_call.1} parent=31 // pred_check
          %p369 = pneg %p135
        $region38: #{tpu_custom_call.1} parent=31 // pred_check_branch
          %371 = sbr.rel (%p369) target = $region40
        $region39: #{tpu_custom_call.1} parent=31 // pred_region
          %s372 = smul.u32 2, %s29
          %374 = vsyncadd %s360, 0
          %s375 = smul.addr %s30, 2
          %s376 = sadd.s32 %s372, %s375
          %s377 = smul.addr %s376, 8
          %s378 = scalar_lea.hbm %s3, %s377
          %s379 = sshll.u32 %s363, 4
          %s380 = int_to_ptr.vmem [resolvable:$true] %s379
          %s381 = sshll.u32 %s378, 4
          %s382 = int_to_ptr.hbm [resolvable:$true] %s381
          %387 = dma.vmem_to_hbm [thread:$0]  %s380, 256, %s382, %s360, 128, 128, 8
        $region40: #{tpu_custom_call.1} parent=31 // pred_fallthru
          _
        // Predicated region
        $region41: #{tpu_custom_call.1} parent=31 // pred_check
          %p388 = pneg %p163
        $region42: #{tpu_custom_call.1} parent=31 // pred_check_branch
          %390 = sbr.rel (%p388) target = $region44
        $region43: #{tpu_custom_call.1} parent=31 // pred_region
          %s391 = smul.u32 2, %s29
          %393 = vsyncadd %s365, 0
          %s394 = smul.addr %s30, 2
          %s395 = sadd.s32 %s391, %s394
          %s396 = smul.addr %s395, 8
          %s397 = scalar_lea.hbm %s4, %s396
          %s398 = sshll.u32 %s368, 4
          %s399 = int_to_ptr.vmem [resolvable:$true] %s398
          %s400 = sshll.u32 %s397, 4
          %s401 = int_to_ptr.hbm [resolvable:$true] %s400
          %406 = dma.vmem_to_hbm [thread:$0]  %s399, 256, %s401, %s365, 128, 128, 8
        $region44: #{tpu_custom_call.1} parent=31 // pred_fallthru
          _
      $region32: #{tpu_custom_call.1} parent=5 // pred_fallthru
        _
      %p407 = scmp.le.s32.totalorder 2, %s20
      // Predicated region
      $region45: #{tpu_custom_call.1} parent=5 // pred_check
        %p408 = pneg %p407
      $region46: #{tpu_custom_call.1} parent=5 // pred_check_branch
        %410 = sbr.rel (%p408) target = $region48
      $region47: #{tpu_custom_call.1} parent=5 // pred_region
        %s411 = ssub.s32 %s20, 2
        // Predicated region
        $region49: #{tpu_custom_call.1} parent=47 // pred_check
          %p412 = pneg %p141
        $region50: #{tpu_custom_call.1} parent=47 // pred_check_branch
          %414 = sbr.rel (%p412) target = $region52
        $region51: #{tpu_custom_call.1} parent=47 // pred_region
          %s415 = sand.u32 %s126, 1
          %s416 = scalar_lea.sflag [#allocation4], %s415
          %s417 = sand.u32 %s126, 1
          %s418 = smul.addr %s417, 16
          %s419 = scalar_lea.vmem [#allocation5], %s418
          %421 = dma.done %s416, 256
        $region52: #{tpu_custom_call.1} parent=47 // pred_fallthru
          _
        // Predicated region
        $region53: #{tpu_custom_call.1} parent=47 // pred_check
          %p422 = pneg %p169
        $region54: #{tpu_custom_call.1} parent=47 // pred_check_branch
          %424 = sbr.rel (%p422) target = $region56
        $region55: #{tpu_custom_call.1} parent=47 // pred_region
          %s425 = sand.u32 %s154, 1
          %s426 = scalar_lea.sflag [#allocation7], %s425
          %s427 = sand.u32 %s154, 1
          %s428 = smul.addr %s427, 16
          %s429 = scalar_lea.vmem [#allocation6], %s428
          %431 = dma.done %s426, 256
        $region56: #{tpu_custom_call.1} parent=47 // pred_fallthru
          _
      $region48: #{tpu_custom_call.1} parent=5 // pred_fallthru
        _
    $region6: #{tpu_custom_call.1} parent=1 // loop_footer
      %s24 = sadd.s32 1, %s20
    $region7: #{tpu_custom_call.1} parent=1 // loop_footer_branch
      %19 = sbr.rel target = $region3
    $region8: #{tpu_custom_call.1} parent=1 // loop_exit
      _
    %432 = vsyncpa [#allocation3], 1
    %s433 = scalar_lea.sflag [#allocation3], 1
    %434 = vsyncpa %s433, 1
    %435 = vsyncpa [#allocation4], 1
    %s436 = scalar_lea.sflag [#allocation4], 1
    %437 = vsyncpa %s436, 1
    %438 = vsyncpa [#allocation7], 1
    %s439 = scalar_lea.sflag [#allocation7], 1
    %440 = vsyncpa %s439, 1

</llo_original>
